<compile_context>
chip_gen: v7x
topology: tpu7x:2x2x1
jax: 0.10.0
libtpu: 0.0.40
codegen_flags: <defaults>
</compile_context>

<pallas_src>
import functools
import math

import jax
import jax.numpy as jnp
from jax.experimental import pallas as pl
from jax.experimental.pallas import tpu as pltpu


def _additive_attention_kernel(x_ref, mask_ref, w1t_ref, b1_ref, w2_ref, b2_ref,
                               o_ref, *, mxu_dtype):
    bb, lp, d = x_ref.shape
    h = w1t_ref.shape[1]

    xv = x_ref[...]                                                      # single VMEM read

    # ---- fc1 on the MXU: (bb*lp, D) @ (D, H), bf16 operands, f32 accumulation ----
    x2 = xv.reshape(bb * lp, d).astype(mxu_dtype)                        # lp % 8 == 0 -> layout-free
    e = jnp.dot(x2, w1t_ref[...], preferred_element_type=jnp.float32)    # (bb*lp, H) f32
    e = jnp.tanh(e + b1_ref[...].astype(jnp.float32))                    # (1, H) row broadcast
    e = e.reshape(bb, lp, h)

    # ---- fc2 (out_features == 1): elementwise * w2, lane reduce over H ----
    w2 = w2_ref[...].astype(jnp.float32).reshape(1, 1, h)
    logits = jnp.sum(e * w2, axis=-1, keepdims=True) + b2_ref[0]         # (bb, lp, 1)

    # ---- exp + mask + normalize over the log axis (all f32) ----
    alpha = jnp.exp(logits) * mask_ref[...].astype(jnp.float32)          # (bb, lp, 1)
    denom = jnp.sum(alpha, axis=1, keepdims=True) + 1e-8                 # (bb, 1, 1)
    alpha = alpha * pl.reciprocal(denom, approx=True)                    # EUP, cheaper than divide

    # ---- weighted pooling: out[b, d] = sum_l alpha[b, l] * x[b, l, d] ----
    pooled = jnp.sum(xv.astype(jnp.float32) * alpha, axis=1)             # (bb, D)
    o_ref[...] = pooled.astype(o_ref.dtype)


def _pick_block_b(B, Lp, D, H, itemsize, vmem_budget_bytes=8 * 1024 * 1024):
    """Largest multiple-of-8 batch tile dividing B that keeps the double-buffered working set
    under a conservative VMEM budget (leaves headroom even on v7x's 64 MiB)."""
    per_row = (2 * (Lp * D * itemsize + Lp * 4 + D * 4)                  # pipelined in/out buffers
               + Lp * D * 4 + Lp * D * 2 + Lp * H * 4 + Lp * 8)          # in-kernel temporaries
    bb = min(B, 1024, max(8, vmem_budget_bytes // max(per_row, 1)))
    bb -= bb % 8
    while bb >= 8 and B % bb:
        bb -= 8
    return bb if bb >= 8 else B


def additive_attention_pool(x, mask, w1, b1, w2, b2, *, apply_mask=True, block_b=None,
                            mxu_dtype=jnp.bfloat16, vmem_limit_bytes=32 * 1024 * 1024):
    """x: (B, L, D), mask: (B, L), w1: (H, D), b1: (H,), w2: (1, H), b2: (1,) -> (B, D)."""
    B, L, D = x.shape
    H, D_in = w1.shape
    assert D == D_in, "fc1 in_features must match the news vector dim"
    assert w2.shape == (1, H) and b1.shape == (H,) and b2.shape == (1,)

    # Effective mask: ones when the module does not use the mask (identical semantics).
    mask_eff = mask.astype(jnp.float32) if apply_mask else jnp.ones((B, L), jnp.float32)

    # Pad the log axis to a multiple of 8 (sublane) so the in-kernel flatten is layout-free.
    # Padded rows carry mask 0 and therefore contribute exactly nothing.
    Lp = max(8, ((L + 7) // 8) * 8)
    if Lp != L:
        x = jnp.pad(x, ((0, 0), (0, Lp - L), (0, 0)))
        mask_eff = jnp.pad(mask_eff, ((0, 0), (0, Lp - L)))
    mask3 = mask_eff[:, :, None]                                         # (B, Lp, 1)

    if block_b is None:
        block_b = _pick_block_b(B, Lp, D, H, x.dtype.itemsize)
    assert B % block_b == 0, "block_b must divide the batch"
    assert block_b % 8 == 0 or block_b == B, \
        "block_b must be a multiple of 8 (sublane) or the full batch"

    # K-major RHS for the MXU, pre-cast to the GEMM dtype (one-time, outside the kernel).
    w1t = jnp.transpose(w1).astype(mxu_dtype)                            # (D, H)
    b1_row = b1.reshape(1, H).astype(jnp.float32)
    w2_row = w2.reshape(1, H).astype(jnp.float32)
    b2_s = b2.reshape(1).astype(jnp.float32)

    kernel = functools.partial(_additive_attention_kernel, mxu_dtype=mxu_dtype)
    grid = (B // block_b,)
    return pl.pallas_call(
        kernel,
        out_shape=jax.ShapeDtypeStruct((B, D), x.dtype),
        grid_spec=pltpu.PrefetchScalarGridSpec(
            num_scalar_prefetch=0,
            grid=grid,
            in_specs=[
                pl.BlockSpec((block_b, Lp, D), lambda i: (i, 0, 0)),     # x tile
                pl.BlockSpec((block_b, Lp, 1), lambda i: (i, 0, 0)),     # mask tile
                pl.BlockSpec((D, H), lambda i: (0, 0)),                  # W1^T (DMA hoisted)
                pl.BlockSpec((1, H), lambda i: (0, 0)),                  # b1
                pl.BlockSpec((1, H), lambda i: (0, 0)),                  # w2
                pl.BlockSpec(memory_space=pltpu.MemorySpace.SMEM),       # b2 scalar
            ],
            out_specs=pl.BlockSpec((block_b, D), lambda i: (i, 0)),
        ),
        compiler_params=pltpu.CompilerParams(
            dimension_semantics=("parallel",),
            vmem_limit_bytes=vmem_limit_bytes,
        ),
    )(x, mask3, w1t, b1_row, w2_row, b2_s)


def user_encoder_forward(log_vec, log_mask, w1, b1, w2, b2, *, pad_doc=None,
                         user_log_mask=False, use_padded_news_embedding=False,
                         block_b=None, mxu_dtype=jnp.bfloat16):
    """Full UserEncoder.forward: optional pad-doc blend + additive-attention pooling."""
    assert not (use_padded_news_embedding and user_log_mask), "Conflicting config"
    if use_padded_news_embedding:
        # Trivial elementwise blend kept in plain JAX (memory-bound; XLA fuses it with the copy).
        m = log_mask[:, :, None].astype(log_vec.dtype)
        log_vec = log_vec * m + pad_doc.reshape(1, 1, -1).astype(log_vec.dtype) * (1.0 - m)
    return additive_attention_pool(log_vec, log_mask, w1, b1, w2, b2,
                                   apply_mask=user_log_mask, block_b=block_b,
                                   mxu_dtype=mxu_dtype)


if __name__ == "__main__":
    # Small shapes consistent with the module: news_dim == user_query_vector_dim (required by the
    # module's own constructor/forward), user_log_length = 16, batch = 16 (grid of 2 batch tiles).
    news_dim = 32                 # also the AdditiveAttention hidden size H
    user_query_vector_dim = 32    # fc1 in_features D
    user_log_length = 16
    batch = 16

    key = jax.random.PRNGKey(0)
    k = jax.random.split(key, 6)
    log_vec = jax.random.normal(k[0], (batch, user_log_length, news_dim), dtype=jnp.float32)
    lengths = jax.random.randint(k[1], (batch,), 1, user_log_length + 1)
    log_mask = (jnp.arange(user_log_length)[None, :] < lengths[:, None]).astype(jnp.float32)

    # PyTorch nn.Linear default init: U(-1/sqrt(fan_in), 1/sqrt(fan_in)) for weight and bias.
    bound1 = 1.0 / math.sqrt(user_query_vector_dim)
    w1 = jax.random.uniform(k[2], (news_dim, user_query_vector_dim), jnp.float32, -bound1, bound1)
    b1 = jax.random.uniform(k[3], (news_dim,), jnp.float32, -bound1, bound1)
    bound2 = 1.0 / math.sqrt(news_dim)
    w2 = jax.random.uniform(k[4], (1, news_dim), jnp.float32, -bound2, bound2)
    b2 = jax.random.uniform(k[5], (1,), jnp.float32, -bound2, bound2)

    out = user_encoder_forward(log_vec, log_mask, w1, b1, w2, b2,
                               user_log_mask=True, use_padded_news_embedding=False,
                               block_b=8)
    out = jax.block_until_ready(out)

    # Pure-JAX f32 reference of the PyTorch forward.
    e = jnp.tanh(jnp.einsum('bld,hd->blh', log_vec, w1) + b1)
    a = jnp.exp(jnp.einsum('blh,oh->blo', e, w2) + b2)          # (B, L, 1)
    a = a * log_mask[:, :, None]                                # args.user_log_mask = True
    a = a / (jnp.sum(a, axis=1, keepdims=True) + 1e-8)
    ref = jnp.sum(log_vec * a, axis=1)                          # == bmm(x^T, alpha).reshape(B, -1)

    assert out.shape == (batch, news_dim)
    # Tolerance accounts for the deliberate bf16 MXU operands (f32 accumulation) + approx recip.
    assert bool(jnp.allclose(out, ref, atol=1e-2, rtol=1e-2)), "mismatch vs reference"

    print("KERNEL_OK")
</pallas_src>

<mosaic_0001>
module attributes {stable_mosaic.version = 11 : i64} {
  func.func @_additive_attention_kernel(%arg0: i32, %arg1: memref<8x16x32xf32, #tpu.memory_space<vmem>>, %arg2: memref<8x16x1xf32, #tpu.memory_space<vmem>>, %arg3: memref<32x32xbf16, #tpu.memory_space<vmem>>, %arg4: memref<1x32xf32, #tpu.memory_space<vmem>>, %arg5: memref<1x32xf32, #tpu.memory_space<vmem>>, %arg6: memref<1xf32, #tpu.memory_space<smem>>, %arg7: memref<8x32xf32, #tpu.memory_space<vmem>>) attributes {dimension_semantics = [#tpu.dimension_semantics<parallel>], iteration_bounds = array<i64: 2>, scalar_prefetch = 0 : i64, scratch_operands = 0 : i64, tpu.core_type = #tpu.core_type<tc>, window_params = [{transform_indices = @transform_0, window_bounds = array<i64: 8, 16, 32>}, {transform_indices = @transform_1, window_bounds = array<i64: 8, 16, 1>}, {pipeline_mode = #tpu.pipeline_mode<synchronous>, transform_indices = @transform_2, window_bounds = array<i64: 32, 32>}, {pipeline_mode = #tpu.pipeline_mode<synchronous>, transform_indices = @transform_3, window_bounds = array<i64: 1, 32>}, {pipeline_mode = #tpu.pipeline_mode<synchronous>, transform_indices = @transform_4, window_bounds = array<i64: 1, 32>}, {transform_indices = @transform_5, window_bounds = array<i64: 1>}, {transform_indices = @transform_6, window_bounds = array<i64: 8, 32>}]} {
    %c0 = arith.constant 0 : index
    %c0_0 = arith.constant 0 : index
    %c0_1 = arith.constant 0 : index
    %0 = vector.load %arg1[%c0, %c0_0, %c0_1] : memref<8x16x32xf32, #tpu.memory_space<vmem>>, vector<8x16x32xf32>
    %1 = vector.shape_cast %0 : vector<8x16x32xf32> to vector<128x32xf32>
    %2 = arith.truncf %1 : vector<128x32xf32> to vector<128x32xbf16>
    %c0_2 = arith.constant 0 : index
    %c0_3 = arith.constant 0 : index
    %3 = vector.load %arg3[%c0_2, %c0_3] : memref<32x32xbf16, #tpu.memory_space<vmem>>, vector<32x32xbf16>
    %cst = arith.constant dense<0.000000e+00> : vector<128x32xf32>
    %4 = tpu.matmul %2, %3, %cst {dimension_numbers = #tpu.dot_dimension_numbers<[1], [0], [0], [1], [0, 0, 1, 1], [], []>} : vector<128x32xbf16>, vector<32x32xbf16>, vector<128x32xf32> -> vector<128x32xf32>
    %c0_4 = arith.constant 0 : index
    %c0_5 = arith.constant 0 : index
    %5 = vector.load %arg4[%c0_4, %c0_5] : memref<1x32xf32, #tpu.memory_space<vmem>>, vector<1x32xf32>
    %6 = vector.broadcast %5 : vector<1x32xf32> to vector<128x32xf32>
    %7 = arith.addf %4, %6 : vector<128x32xf32>
    %8 = math.tanh %7 : vector<128x32xf32>
    %9 = vector.shape_cast %8 : vector<128x32xf32> to vector<8x16x32xf32>
    %c0_6 = arith.constant 0 : index
    %c0_7 = arith.constant 0 : index
    %10 = vector.load %arg5[%c0_6, %c0_7] : memref<1x32xf32, #tpu.memory_space<vmem>>, vector<1x32xf32>
    %11 = vector.shape_cast %10 : vector<1x32xf32> to vector<1x1x32xf32>
    %12 = vector.broadcast %11 : vector<1x1x32xf32> to vector<8x16x32xf32>
    %13 = arith.mulf %9, %12 : vector<8x16x32xf32>
    %cst_8 = arith.constant dense<0.000000e+00> : vector<8x16xf32>
    %14 = vector.multi_reduction <add>, %13, %cst_8 [2] : vector<8x16x32xf32> to vector<8x16xf32>
    %15 = vector.shape_cast %14 : vector<8x16xf32> to vector<8x16x1xf32>
    %c0_9 = arith.constant 0 : index
    %16 = memref.load %arg6[%c0_9] : memref<1xf32, #tpu.memory_space<smem>>
    %17 = vector.broadcast %16 : f32 to vector<8x16x1xf32>
    %18 = arith.addf %15, %17 : vector<8x16x1xf32>
    %19 = math.exp %18 : vector<8x16x1xf32>
    %c0_10 = arith.constant 0 : index
    %c0_11 = arith.constant 0 : index
    %c0_12 = arith.constant 0 : index
    %20 = vector.load %arg2[%c0_10, %c0_11, %c0_12] : memref<8x16x1xf32, #tpu.memory_space<vmem>>, vector<8x16x1xf32>
    %21 = arith.mulf %19, %20 : vector<8x16x1xf32>
    %cst_13 = arith.constant dense<0.000000e+00> : vector<8x1xf32>
    %22 = vector.multi_reduction <add>, %21, %cst_13 [1] : vector<8x16x1xf32> to vector<8x1xf32>
    %23 = vector.shape_cast %22 : vector<8x1xf32> to vector<8x1x1xf32>
    %cst_14 = arith.constant 9.99999993E-9 : f32
    %24 = vector.broadcast %cst_14 : f32 to vector<8x1x1xf32>
    %25 = arith.addf %23, %24 : vector<8x1x1xf32>
    %26 = tpu.reciprocal %25 {approx = true} : vector<8x1x1xf32> -> vector<8x1x1xf32>
    %27 = vector.broadcast %26 : vector<8x1x1xf32> to vector<8x16x1xf32>
    %28 = arith.mulf %21, %27 : vector<8x16x1xf32>
    %29 = vector.broadcast %28 : vector<8x16x1xf32> to vector<8x16x32xf32>
    %30 = arith.mulf %0, %29 : vector<8x16x32xf32>
    %cst_15 = arith.constant dense<0.000000e+00> : vector<8x32xf32>
    %31 = vector.multi_reduction <add>, %30, %cst_15 [1] : vector<8x16x32xf32> to vector<8x32xf32>
    %c0_16 = arith.constant 0 : index
    %c0_17 = arith.constant 0 : index
    %32 = vector.load %arg7[%c0_16, %c0_17] : memref<8x32xf32, #tpu.memory_space<vmem>>, vector<8x32xf32>
    tpu.vector_store %arg7[%c0_16, %c0_17], %31 {strides = array<i32>} : memref<8x32xf32, #tpu.memory_space<vmem>>, vector<8x32xf32>,
    return
  }
  func.func @transform_0(%arg0: i32) -> (i32, i32, i32) {
    %c0_i32 = arith.constant 0 : i32
    %c0_i32_0 = arith.constant 0 : i32
    %c0_i32_1 = arith.constant 0 : i32
    return %arg0, %c0_i32, %c0_i32_0 : i32, i32, i32
  }
  func.func @transform_1(%arg0: i32) -> (i32, i32, i32) {
    %c0_i32 = arith.constant 0 : i32
    %c0_i32_0 = arith.constant 0 : i32
    %c0_i32_1 = arith.constant 0 : i32
    return %arg0, %c0_i32, %c0_i32_0 : i32, i32, i32
  }
  func.func @transform_2(%arg0: i32) -> (i32, i32) {
    %c0_i32 = arith.constant 0 : i32
    %c0_i32_0 = arith.constant 0 : i32
    %c0_i32_1 = arith.constant 0 : i32
    return %c0_i32, %c0_i32_0 : i32, i32
  }
  func.func @transform_3(%arg0: i32) -> (i32, i32) {
    %c0_i32 = arith.constant 0 : i32
    %c0_i32_0 = arith.constant 0 : i32
    %c0_i32_1 = arith.constant 0 : i32
    return %c0_i32, %c0_i32_0 : i32, i32
  }
  func.func @transform_4(%arg0: i32) -> (i32, i32) {
    %c0_i32 = arith.constant 0 : i32
    %c0_i32_0 = arith.constant 0 : i32
    %c0_i32_1 = arith.constant 0 : i32
    return %c0_i32, %c0_i32_0 : i32, i32
  }
  func.func @transform_5(%arg0: i32) -> i32 {
    %c0_i32 = arith.constant 0 : i32
    %c0_i32_0 = arith.constant 0 : i32
    return %c0_i32 : i32
  }
  func.func @transform_6(%arg0: i32) -> (i32, i32) {
    %c0_i32 = arith.constant 0 : i32
    %c0_i32_0 = arith.constant 0 : i32
    return %arg0, %c0_i32 : i32, i32
  }
}

</mosaic_0001>

<llo_original>
// kernel: tpu_custom_call.1
$region0: #{tpu_custom_call.1}
  #allocation0 [shape = 'u32[]', space=smem, size = 0x4, offset = 0x4, fixed_abs, tag = 'smem constant byte address 0x4 - core index']
  #allocation1 [shape = 'u32[144,128]{1,0:T(1,128)}', space=vmem, size = 0x12000, scoped, tag = 'internal scratch']
  #allocation2 [shape = 'f32[1]{0:T(128)S(6)}', space=smem, size = 0x200, scoped, tag = 'scoped memory for tpu_custom_call.1']
  %s0 = inlined_call_operand.vmem [shape: f32[16,16,32], index: 0, kind: input, shape index: {}]
  %s1 = inlined_call_operand.vmem [shape: f32[16,16,1], index: 1, kind: input, shape index: {}]
  %s2 = inlined_call_operand.vmem [shape: bf16[32,32], index: 2, kind: input, shape index: {}]
  %s3 = inlined_call_operand.vmem [shape: f32[1,32], index: 3, kind: input, shape index: {}]
  %s4 = inlined_call_operand.vmem [shape: f32[1,32], index: 4, kind: input, shape index: {}]
  %s5 = inlined_call_operand.<no memory space> [shape: f32[1], index: 5, kind: input, shape index: {}]
  %s6 = inlined_call_operand.hbm [shape: f32[16,32], index: 6, kind: output, shape index: {}]
  %s7 = sld [smem:[#allocation0]]
  $region57: #{tpu_custom_call.1} parent=0
    _
  %s9 = ssub.s32 1, %s7
  %s10 = scalar_select 0, %s9, %s7
  %11 = sst [smem:[#allocation2]] %s5
  $region1: #{tpu_custom_call.1} parent=0
    #allocation3 [shape = 'u8[8192]{0}', space=vmem, size = 0x2000, scoped, tag = 'output window, operand 0']
    #allocation4 [shape = 's32[2]{0}', space=sflag, size = 0x8, scoped, tag = 'scoped memory for tpu_custom_call.1']
    %12 = vsyncpa [#allocation4], 0
    %s13 = scalar_lea.sflag [#allocation4], 1
    %14 = vsyncpa %s13, 0
    loop: start=0, step=1, limit=4
    $region2: #{tpu_custom_call.1} parent=1 // loop_pre_header
      _
    $region3: #{tpu_custom_call.1} parent=1 // loop_header
      %s16 = sphi 0, %s20
      %p17 = scmp.ge.s32.totalorder %s16, 4
      %s26 = sphi 0, %s28
      %s29 = sphi 0, %s26
      %s30 = sphi 0, %s29
      %s46 = sphi 0, %s30
      %s52 = sphi 0, %s54
      %s55 = sphi 0, %s52
      %s56 = sphi 0, %s55
      %s72 = sphi 0, %s56
      %s76 = sphi 0, %s76
      %s78 = sphi 0, %s76
      %s79 = sphi 0, %s78
      %s93 = sphi 0, %s79
      %s97 = sphi 0, %s97
      %s99 = sphi 0, %s97
      %s100 = sphi 0, %s99
      %s114 = sphi 0, %s100
      %s118 = sphi 0, %s118
      %s120 = sphi 0, %s118
      %s121 = sphi 0, %s120
      %s135 = sphi 0, %s121
      %s139 = sphi 0, %s139
      %s141 = sphi 0, %s139
      %s142 = sphi 0, %s141
      %s156 = sphi 0, %s142
      %s162 = sphi 0, %s164
      %s165 = sphi 0, %s162
      %s166 = sphi 0, %s165
      %s182 = sphi 0, %s166
    $region4: #{tpu_custom_call.1} parent=1 // loop_header_branch
      %19 = sbr.rel (%p17) target = $region8
    $region5: #{tpu_custom_call.1} parent=1 // loop_body
      %s21 = ssub.s32 %s16, 1
      %s22 = ssub.s32 %s16, 2
      %s23 = sadd.s32 %s16, 1
      %s24 = ssub.s32 %s16, %s23
      %p25 = scmp.eq.s32.totalorder %s24, 0
      %s27 = sadd.s32 %s26, 1
      %s28 = scalar_select %p25, %s26, %s27
      %p31 = pneg %p25
      %p32 = scmp.eq.s32.totalorder %s16, 1
      %p33 = por %p31, %p32
      %p34 = scmp.ne.s32.totalorder %s26, %s29
      %p35 = scmp.eq.s32.totalorder %s16, 0
      %p36 = por %p34, %p35
      %p37 = scmp.ne.s32.totalorder %s26, %s29
      %p38 = scmp.eq.s32.totalorder %s21, 1
      %p39 = por %p37, %p38
      %p40 = scmp.ne.s32.totalorder %s29, %s30
      %p41 = scmp.eq.s32.totalorder %s21, 0
      %p42 = por %p40, %p41
      %p43 = scmp.ne.s32.totalorder %s29, %s30
      %p44 = scmp.eq.s32.totalorder %s22, 1
      %p45 = por %p43, %p44
      %p47 = scmp.ne.s32.totalorder %s30, %s46
      %p48 = scmp.eq.s32.totalorder %s22, 0
      %p49 = por %p47, %p48
      %s50 = ssub.s32 %s16, %s23
      %p51 = scmp.eq.s32.totalorder %s50, 0
      %s53 = sadd.s32 %s52, 1
      %s54 = scalar_select %p51, %s52, %s53
      %p57 = pneg %p51
      %p58 = scmp.eq.s32.totalorder %s16, 1
      %p59 = por %p57, %p58
      %p60 = scmp.ne.s32.totalorder %s52, %s55
      %p61 = scmp.eq.s32.totalorder %s16, 0
      %p62 = por %p60, %p61
      %p63 = scmp.ne.s32.totalorder %s52, %s55
      %p64 = scmp.eq.s32.totalorder %s21, 1
      %p65 = por %p63, %p64
      %p66 = scmp.ne.s32.totalorder %s55, %s56
      %p67 = scmp.eq.s32.totalorder %s21, 0
      %p68 = por %p66, %p67
      %p69 = scmp.ne.s32.totalorder %s55, %s56
      %p70 = scmp.eq.s32.totalorder %s22, 1
      %p71 = por %p69, %p70
      %p73 = scmp.ne.s32.totalorder %s56, %s72
      %p74 = scmp.eq.s32.totalorder %s22, 0
      %p75 = por %p73, %p74
      %s77 = sadd.s32 %s76, 1
      %p80 = scmp.eq.s32.totalorder %s16, 1
      %p81 = scmp.ne.s32.totalorder %s76, %s78
      %p82 = scmp.eq.s32.totalorder %s16, 0
      %p83 = por %p81, %p82
      %p84 = scmp.ne.s32.totalorder %s76, %s78
      %p85 = scmp.eq.s32.totalorder %s21, 1
      %p86 = por %p84, %p85
      %p87 = scmp.ne.s32.totalorder %s78, %s79
      %p88 = scmp.eq.s32.totalorder %s21, 0
      %p89 = por %p87, %p88
      %p90 = scmp.ne.s32.totalorder %s78, %s79
      %p91 = scmp.eq.s32.totalorder %s22, 1
      %p92 = por %p90, %p91
      %p94 = scmp.ne.s32.totalorder %s79, %s93
      %p95 = scmp.eq.s32.totalorder %s22, 0
      %p96 = por %p94, %p95
      %s98 = sadd.s32 %s97, 1
      %p101 = scmp.eq.s32.totalorder %s16, 1
      %p102 = scmp.ne.s32.totalorder %s97, %s99
      %p103 = scmp.eq.s32.totalorder %s16, 0
      %p104 = por %p102, %p103
      %p105 = scmp.ne.s32.totalorder %s97, %s99
      %p106 = scmp.eq.s32.totalorder %s21, 1
      %p107 = por %p105, %p106
      %p108 = scmp.ne.s32.totalorder %s99, %s100
      %p109 = scmp.eq.s32.totalorder %s21, 0
      %p110 = por %p108, %p109
      %p111 = scmp.ne.s32.totalorder %s99, %s100
      %p112 = scmp.eq.s32.totalorder %s22, 1
      %p113 = por %p111, %p112
      %p115 = scmp.ne.s32.totalorder %s100, %s114
      %p116 = scmp.eq.s32.totalorder %s22, 0
      %p117 = por %p115, %p116
      %s119 = sadd.s32 %s118, 1
      %p122 = scmp.eq.s32.totalorder %s16, 1
      %p123 = scmp.ne.s32.totalorder %s118, %s120
      %p124 = scmp.eq.s32.totalorder %s16, 0
      %p125 = por %p123, %p124
      %p126 = scmp.ne.s32.totalorder %s118, %s120
      %p127 = scmp.eq.s32.totalorder %s21, 1
      %p128 = por %p126, %p127
      %p129 = scmp.ne.s32.totalorder %s120, %s121
      %p130 = scmp.eq.s32.totalorder %s21, 0
      %p131 = por %p129, %p130
      %p132 = scmp.ne.s32.totalorder %s120, %s121
      %p133 = scmp.eq.s32.totalorder %s22, 1
      %p134 = por %p132, %p133
      %p136 = scmp.ne.s32.totalorder %s121, %s135
      %p137 = scmp.eq.s32.totalorder %s22, 0
      %p138 = por %p136, %p137
      %s140 = sadd.s32 %s139, 1
      %p143 = scmp.eq.s32.totalorder %s16, 1
      %p144 = scmp.ne.s32.totalorder %s139, %s141
      %p145 = scmp.eq.s32.totalorder %s16, 0
      %p146 = por %p144, %p145
      %p147 = scmp.ne.s32.totalorder %s139, %s141
      %p148 = scmp.eq.s32.totalorder %s21, 1
      %p149 = por %p147, %p148
      %p150 = scmp.ne.s32.totalorder %s141, %s142
      %p151 = scmp.eq.s32.totalorder %s21, 0
      %p152 = por %p150, %p151
      %p153 = scmp.ne.s32.totalorder %s141, %s142
      %p154 = scmp.eq.s32.totalorder %s22, 1
      %p155 = por %p153, %p154
      %p157 = scmp.ne.s32.totalorder %s142, %s156
      %p158 = scmp.eq.s32.totalorder %s22, 0
      %p159 = por %p157, %p158
      %s160 = ssub.s32 %s16, %s23
      %p161 = scmp.eq.s32.totalorder %s160, 0
      %s163 = sadd.s32 %s162, 1
      %s164 = scalar_select %p161, %s162, %s163
      %p167 = pneg %p161
      %p168 = scmp.eq.s32.totalorder %s16, 1
      %p169 = por %p167, %p168
      %p170 = scmp.ne.s32.totalorder %s162, %s165
      %p171 = scmp.eq.s32.totalorder %s16, 0
      %p172 = por %p170, %p171
      %p173 = scmp.ne.s32.totalorder %s162, %s165
      %p174 = scmp.eq.s32.totalorder %s21, 1
      %p175 = por %p173, %p174
      %p176 = scmp.ne.s32.totalorder %s165, %s166
      %p177 = scmp.eq.s32.totalorder %s21, 0
      %p178 = por %p176, %p177
      %p179 = scmp.ne.s32.totalorder %s165, %s166
      %p180 = scmp.eq.s32.totalorder %s22, 1
      %p181 = por %p179, %p180
      %p183 = scmp.ne.s32.totalorder %s166, %s182
      %p184 = scmp.eq.s32.totalorder %s22, 0
      %p185 = por %p183, %p184
      %p186 = scmp.le.s32.totalorder 1, %s16
      %p187 = scmp.lt.s32.totalorder %s16, 3
      %p188 = pnand %p186, %p187
      %p189 = pneg %p188
      // Predicated region
      $region9: #{tpu_custom_call.1} parent=5 // pred_check
        _
      $region10: #{tpu_custom_call.1} parent=5 // pred_check_branch
        %191 = sbr.rel (%p188) target = $region12
      $region11: #{tpu_custom_call.1} parent=5 // pred_region
        %s192 = ssub.s32 %s16, 1
        // Predicated region
        $region13: #{tpu_custom_call.1} parent=11 // pred_check
          %p193 = pneg %p89
        $region14: #{tpu_custom_call.1} parent=11 // pred_check_branch
          %195 = sbr.rel (%p193) target = $region16
        $region15: #{tpu_custom_call.1} parent=11 // pred_region
          _
        $region16: #{tpu_custom_call.1} parent=11 // pred_fallthru
          _
        // Predicated region
        $region17: #{tpu_custom_call.1} parent=11 // pred_check
          %p196 = pneg %p110
        $region18: #{tpu_custom_call.1} parent=11 // pred_check_branch
          %198 = sbr.rel (%p196) target = $region20
        $region19: #{tpu_custom_call.1} parent=11 // pred_region
          _
        $region20: #{tpu_custom_call.1} parent=11 // pred_fallthru
          _
        // Predicated region
        $region21: #{tpu_custom_call.1} parent=11 // pred_check
          %p199 = pneg %p131
        $region22: #{tpu_custom_call.1} parent=11 // pred_check_branch
          %201 = sbr.rel (%p199) target = $region24
        $region23: #{tpu_custom_call.1} parent=11 // pred_region
          _
        $region24: #{tpu_custom_call.1} parent=11 // pred_fallthru
          _
        // Predicated region
        $region25: #{tpu_custom_call.1} parent=11 // pred_check
          %p202 = pneg %p152
        $region26: #{tpu_custom_call.1} parent=11 // pred_check_branch
          %204 = sbr.rel (%p202) target = $region28
        $region27: #{tpu_custom_call.1} parent=11 // pred_region
          _
        $region28: #{tpu_custom_call.1} parent=11 // pred_fallthru
          _
      $region12: #{tpu_custom_call.1} parent=5 // pred_fallthru
        _
      %p205 = scmp.lt.s32.totalorder %s16, 2
      // Predicated region
      $region29: #{tpu_custom_call.1} parent=5 // pred_check
        %p206 = pneg %p205
      $region30: #{tpu_custom_call.1} parent=5 // pred_check_branch
        %208 = sbr.rel (%p206) target = $region32
      $region31: #{tpu_custom_call.1} parent=5 // pred_region
        // Predicated region
        $region33: #{tpu_custom_call.1} parent=31 // pred_check
          %p209 = pneg %p36
        $region34: #{tpu_custom_call.1} parent=31 // pred_check_branch
          %211 = sbr.rel (%p209) target = $region36
        $region35: #{tpu_custom_call.1} parent=31 // pred_region
          %s212 = smul.u32 8, %s16
          %p213 = scmp.lt.s32.totalorder %s212, 15
          %s214 = scalar_select %p213, %s212, 15
          %s215 = smul.addr %s214, 2
          %s216 = smul.addr %s215, 8
          %s217 = scalar_lea.vmem %s0, %s216
          %s218 = smul.u32 8, %s16
        $region36: #{tpu_custom_call.1} parent=31 // pred_fallthru
          _
        // Predicated region
        $region37: #{tpu_custom_call.1} parent=31 // pred_check
          %p219 = pneg %p62
        $region38: #{tpu_custom_call.1} parent=31 // pred_check_branch
          %221 = sbr.rel (%p219) target = $region40
        $region39: #{tpu_custom_call.1} parent=31 // pred_region
          %s222 = smul.u32 8, %s16
          %p223 = scmp.lt.s32.totalorder %s222, 15
          %s224 = scalar_select %p223, %s222, 15
          %s225 = smul.addr %s224, 2
          %s226 = smul.addr %s225, 8
          %s227 = scalar_lea.vmem %s1, %s226
          %s228 = smul.u32 8, %s16
        $region40: #{tpu_custom_call.1} parent=31 // pred_fallthru
          _
      $region32: #{tpu_custom_call.1} parent=5 // pred_fallthru
        _
      %p229 = scmp.le.s32.totalorder 1, %s16
      %p230 = scmp.lt.s32.totalorder %s16, 3
      %p231 = pnand %p229, %p230
      %p232 = pneg %p231
      // Predicated region
      $region41: #{tpu_custom_call.1} parent=5 // pred_check
        _
      $region42: #{tpu_custom_call.1} parent=5 // pred_check_branch
        %234 = sbr.rel (%p231) target = $region44
      $region43: #{tpu_custom_call.1} parent=5 // pred_region
        %s235 = ssub.s32 %s16, 1
        %s236 = smul.u32 8, %s21
        %p237 = scmp.lt.s32.totalorder %s236, 15
        %s238 = scalar_select %p237, %s236, 15
        %s239 = smul.addr %s238, 2
        %s240 = smul.addr %s239, 8
        %s241 = scalar_lea.vmem %s0, %s240
        %p242 = pneg %p42
        %p243 = pneg %p39
        %s244 = smul.u32 8, %s21
        %p245 = scmp.lt.s32.totalorder %s244, 15
        %s246 = scalar_select %p245, %s244, 15
        %s247 = smul.addr %s246, 2
        %s248 = smul.addr %s247, 8
        %s249 = scalar_lea.vmem %s1, %s248
        %p250 = pneg %p68
        %p251 = pneg %p65
        %p252 = pneg %p89
        %p253 = pneg %p86
        %p254 = pneg %p110
        %p255 = pneg %p107
        %p256 = pneg %p131
        %p257 = pneg %p128
        %p258 = pneg %p152
        %p259 = pneg %p149
        %p260 = pneg %p178
        %p261 = pneg %p175
        %s262 = sand.u32 %s165, 1
        %s263 = scalar_lea.sflag [#allocation4], %s262
        %s264 = sand.u32 %s165, 1
        %s265 = smul.addr %s264, 8
        %s266 = scalar_lea.vmem [#allocation3], %s265
        %s267 = smul.u32 8, %s21
        %p268 = scmp.lt.s32.totalorder %s267, 15
        %s269 = scalar_select %p268, %s267, 15
        %s270 = smul.addr %s269, 2
        %s271 = smul.addr %s270, 8
        %s272 = scalar_lea.vmem %s0, %s271
        %s273 = smul.u32 8, %s21
        %s274 = smul.u32 8, %s21
        %p275 = scmp.lt.s32.totalorder %s274, 15
        %s276 = scalar_select %p275, %s274, 15
        %s277 = smul.addr %s276, 2
        %s278 = smul.addr %s277, 8
        %s279 = scalar_lea.vmem %s1, %s278
        %s280 = smul.u32 8, %s21
        %v282 = vld [vmem:[%s272] sm:$0xff]
        %v283 = vld [vmem:[%s272 + $0x8] sm:$0xff]
        %v284 = vld [vmem:[%s272 + $0x10] sm:$0xff]
        %v285 = vld [vmem:[%s272 + $0x18] sm:$0xff]
        %v286 = vld [vmem:[%s272 + $0x20] sm:$0xff]
        %v287 = vld [vmem:[%s272 + $0x28] sm:$0xff]
        %v288 = vld [vmem:[%s272 + $0x30] sm:$0xff]
        %v289 = vld [vmem:[%s272 + $0x38] sm:$0xff]
        %v290 = vld [vmem:[%s272 + $0x40] sm:$0xff]
        %v291 = vld [vmem:[%s272 + $0x48] sm:$0xff]
        %v292 = vld [vmem:[%s272 + $0x50] sm:$0xff]
        %v293 = vld [vmem:[%s272 + $0x58] sm:$0xff]
        %v294 = vld [vmem:[%s272 + $0x60] sm:$0xff]
        %v295 = vld [vmem:[%s272 + $0x68] sm:$0xff]
        %v296 = vld [vmem:[%s272 + $0x70] sm:$0xff]
        %v297 = vld [vmem:[%s272 + $0x78] sm:$0xff]
        %v298 = vpack.c.bf16 %v283, %v282
        %v299 = vpack.c.bf16 %v285, %v284
        %v300 = vpack.c.bf16 %v287, %v286
        %v301 = vpack.c.bf16 %v289, %v288
        %v302 = vpack.c.bf16 %v291, %v290
        %v303 = vpack.c.bf16 %v293, %v292
        %v304 = vpack.c.bf16 %v295, %v294
        %v305 = vpack.c.bf16 %v297, %v296
        %v306 = vld [vmem:[%s2] sm:$0xf]
        %v307 = vld [vmem:[%s2 + $0x4] sm:$0xf]
        %v308 = vld [vmem:[%s2 + $0x8] sm:$0xf]
        %v309 = vld [vmem:[%s2 + $0xc] sm:$0xf]
        %v310 = vld [vmem:[%s3] sm:$0x1]
        %v312 = vlaneseq
        %v313 = vshrl.u32 %v312, 7
        %v314 = vsub.s32 0, %v313
        %v315 = vrot.slane %v310, %v314
        %v321 = vunpack.c.l.b16 %v306
        %v322 = vunpack.c.l.b16 %v307
        %v323 = vunpack.c.l.b16 %v308
        %v324 = vunpack.c.l.b16 %v309
        %v325 = vpack.c.b16 %v322, %v321
        %v326 = vpack.c.b16 %v324, %v323
        %vm329 = vcmask 261120
        %v331 = vsel %vm329, %v298, 0
        %v334 = vsel %vm329, %v299, 0
        %v337 = vsel %vm329, %v300, 0
        %v340 = vsel %vm329, %v301, 0
        %v343 = vsel %vm329, %v302, 0
        %v346 = vsel %vm329, %v303, 0
        %v349 = vsel %vm329, %v304, 0
        %v352 = vsel %vm329, %v305, 0
        %354 = vmatprep.subr.bf16.mxu0 0
        %355 = vmatpush1.bf16.msra.mxu0 %v325
        %356 = vmatprep.subr.bf16.mxu0 0
        %357 = vmatpush1.bf16.msra.mxu0 %v326
        %358 = vmatprep.subr.bf16.mxu0 0
        %359 = vmatpush1.bf16.msra.mxu0 0
        %360 = vmatprep.subr.bf16.mxu0 0
        %361 = vmatpush1.bf16.msra.mxu0 0
        %362 = vmatprep.subr.bf16.mxu0 0
        %363 = vmatpush1.bf16.msra.mxu0 0
        %364 = vmatprep.subr.bf16.mxu0 0
        %365 = vmatpush1.bf16.msra.mxu0 0
        %366 = vmatprep.subr.bf16.mxu0 0
        %367 = vmatpush1.bf16.msra.mxu0 0
        %368 = vmatprep.subr.bf16.mxu0 0
        %369 = vmatpush1.bf16.msra.mxu0 0
        %370 = vmatprep.subr.bf16.mxu0 0
        %371 = vmatpush1.bf16.msra.mxu0 0
        %372 = vmatprep.subr.bf16.mxu0 0
        %373 = vmatpush1.bf16.msra.mxu0 0
        %374 = vmatprep.subr.bf16.mxu0 0
        %375 = vmatpush1.bf16.msra.mxu0 0
        %376 = vmatprep.subr.bf16.mxu0 0
        %377 = vmatpush1.bf16.msra.mxu0 0
        %378 = vmatprep.subr.bf16.mxu0 0
        %379 = vmatpush1.bf16.msra.mxu0 0
        %380 = vmatprep.subr.bf16.mxu0 0
        %381 = vmatpush1.bf16.msra.mxu0 0
        %382 = vmatprep.subr.bf16.mxu0 0
        %383 = vmatpush1.bf16.msra.mxu0 0
        %384 = vmatprep.subr.bf16.mxu0 0
        %385 = vmatpush1.bf16.msra.mxu0 0
        %386 = vmatprep.mubr.bf16.mxu0 0
        %387 = vmatmul.mubr.bf16.gmra.mrb[0].mxu0 %v331
        %v388 = vpop.f32.mrb[0].mxu0
        %v389 = vadd.f32 %v315, %v388
        %v390 = vpop.f32.mrb[0].mxu0
        %v391 = vpop.f32.mrb[0].mxu0
        %v392 = vadd.f32 %v315, %v391
        %v393 = vpop.f32.mrb[0].mxu0
        %394 = vmatprep.mubr.bf16.mxu0 0
        %395 = vmatmul.mubr.bf16.gmra.mrb[0].mxu0 %v334
        %v396 = vpop.f32.mrb[0].mxu0
        %v397 = vadd.f32 %v315, %v396
        %v398 = vpop.f32.mrb[0].mxu0
        %v399 = vpop.f32.mrb[0].mxu0
        %v400 = vadd.f32 %v315, %v399
        %v401 = vpop.f32.mrb[0].mxu0
        %402 = vmatprep.mubr.bf16.mxu0 0
        %403 = vmatmul.mubr.bf16.gmra.mrb[0].mxu0 %v337
        %v404 = vpop.f32.mrb[0].mxu0
        %v405 = vadd.f32 %v315, %v404
        %v406 = vpop.f32.mrb[0].mxu0
        %v407 = vpop.f32.mrb[0].mxu0
        %v408 = vadd.f32 %v315, %v407
        %v409 = vpop.f32.mrb[0].mxu0
        %410 = vmatprep.mubr.bf16.mxu0 0
        %411 = vmatmul.mubr.bf16.gmra.mrb[0].mxu0 %v340
        %v412 = vpop.f32.mrb[0].mxu0
        %v413 = vadd.f32 %v315, %v412
        %v414 = vpop.f32.mrb[0].mxu0
        %v415 = vpop.f32.mrb[0].mxu0
        %v416 = vadd.f32 %v315, %v415
        %v417 = vpop.f32.mrb[0].mxu0
        %418 = vmatprep.mubr.bf16.mxu0 0
        %419 = vmatmul.mubr.bf16.gmra.mrb[0].mxu0 %v343
        %v420 = vpop.f32.mrb[0].mxu0
        %v421 = vadd.f32 %v315, %v420
        %v422 = vpop.f32.mrb[0].mxu0
        %v423 = vpop.f32.mrb[0].mxu0
        %v424 = vadd.f32 %v315, %v423
        %v425 = vpop.f32.mrb[0].mxu0
        %426 = vmatprep.mubr.bf16.mxu0 0
        %427 = vmatmul.mubr.bf16.gmra.mrb[0].mxu0 %v346
        %v428 = vpop.f32.mrb[0].mxu0
        %v429 = vadd.f32 %v315, %v428
        %v430 = vpop.f32.mrb[0].mxu0
        %v431 = vpop.f32.mrb[0].mxu0
        %v432 = vadd.f32 %v315, %v431
        %v433 = vpop.f32.mrb[0].mxu0
        %434 = vmatprep.mubr.bf16.mxu0 0
        %435 = vmatmul.mubr.bf16.gmra.mrb[0].mxu0 %v349
        %v436 = vpop.f32.mrb[0].mxu0
        %v437 = vadd.f32 %v315, %v436
        %v438 = vpop.f32.mrb[0].mxu0
        %v439 = vpop.f32.mrb[0].mxu0
        %v440 = vadd.f32 %v315, %v439
        %v441 = vpop.f32.mrb[0].mxu0
        %442 = vmatprep.mubr.bf16.mxu0 0
        %443 = vmatmul.mubr.bf16.gmra.mrb[0].mxu0 %v352
        %v444 = vpop.f32.mrb[0].mxu0
        %v445 = vadd.f32 %v315, %v444
        %v446 = vpop.f32.mrb[0].mxu0
        %v447 = vpop.f32.mrb[0].mxu0
        %v448 = vadd.f32 %v315, %v447
        %v449 = vpop.f32.mrb[0].mxu0
        %450 = vdwg.mxu0
        %v451 = vtanh.pop %v389
        %v452 = vtanh.pop %v392
        %v453 = vtanh.pop %v397
        %v454 = vtanh.pop %v400
        %v455 = vtanh.pop %v405
        %v456 = vtanh.pop %v408
        %v457 = vtanh.pop %v413
        %v458 = vtanh.pop %v416
        %v459 = vtanh.pop %v421
        %v460 = vtanh.pop %v424
        %v461 = vtanh.pop %v429
        %v462 = vtanh.pop %v432
        %v463 = vtanh.pop %v437
        %v464 = vtanh.pop %v440
        %v465 = vtanh.pop %v445
        %v466 = vtanh.pop %v448
        %v467 = vld [vmem:[%s4] sm:$0x1]
        %v469 = vlaneseq
        %v470 = vshrl.u32 %v469, 7
        %v471 = vsub.s32 0, %v470
        %v472 = vrot.slane %v467, %v471
        %v474 = vmul.f32 %v451, %v472
        %v475 = vmul.f32 %v452, %v472
        %v476 = vmul.f32 %v453, %v472
        %v477 = vmul.f32 %v454, %v472
        %v478 = vmul.f32 %v455, %v472
        %v479 = vmul.f32 %v456, %v472
        %v480 = vmul.f32 %v457, %v472
        %v481 = vmul.f32 %v458, %v472
        %v482 = vmul.f32 %v459, %v472
        %v483 = vmul.f32 %v460, %v472
        %v484 = vmul.f32 %v461, %v472
        %v485 = vmul.f32 %v462, %v472
        %v486 = vmul.f32 %v463, %v472
        %v487 = vmul.f32 %v464, %v472
        %v488 = vmul.f32 %v465, %v472
        %v489 = vmul.f32 %v466, %v472
        %v490 = vsel %vm329, %v474, 0.0
        %491 = vadd.xlane.f32.xlu0 %v490
        %v492 = vpop.xlane.xlu0 %491
        %v493 = vsel %vm329, %v475, 0.0
        %494 = vadd.xlane.f32.xlu0 %v493
        %v495 = vpop.xlane.xlu0 %494
        %v496 = vsel %vm329, %v476, 0.0
        %497 = vadd.xlane.f32.xlu0 %v496
        %v498 = vpop.xlane.xlu0 %497
        %v499 = vsel %vm329, %v477, 0.0
        %500 = vadd.xlane.f32.xlu0 %v499
        %v501 = vpop.xlane.xlu0 %500
        %v502 = vsel %vm329, %v478, 0.0
        %503 = vadd.xlane.f32.xlu0 %v502
        %v504 = vpop.xlane.xlu0 %503
        %v505 = vsel %vm329, %v479, 0.0
        %506 = vadd.xlane.f32.xlu0 %v505
        %v507 = vpop.xlane.xlu0 %506
        %v508 = vsel %vm329, %v480, 0.0
        %509 = vadd.xlane.f32.xlu0 %v508
        %v510 = vpop.xlane.xlu0 %509
        %v511 = vsel %vm329, %v481, 0.0
        %512 = vadd.xlane.f32.xlu0 %v511
        %v513 = vpop.xlane.xlu0 %512
        %v514 = vsel %vm329, %v482, 0.0
        %515 = vadd.xlane.f32.xlu0 %v514
        %v516 = vpop.xlane.xlu0 %515
        %v517 = vsel %vm329, %v483, 0.0
        %518 = vadd.xlane.f32.xlu0 %v517
        %v519 = vpop.xlane.xlu0 %518
        %v520 = vsel %vm329, %v484, 0.0
        %521 = vadd.xlane.f32.xlu0 %v520
        %v522 = vpop.xlane.xlu0 %521
        %v523 = vsel %vm329, %v485, 0.0
        %524 = vadd.xlane.f32.xlu0 %v523
        %v525 = vpop.xlane.xlu0 %524
        %v526 = vsel %vm329, %v486, 0.0
        %527 = vadd.xlane.f32.xlu0 %v526
        %v528 = vpop.xlane.xlu0 %527
        %v529 = vsel %vm329, %v487, 0.0
        %530 = vadd.xlane.f32.xlu0 %v529
        %v531 = vpop.xlane.xlu0 %530
        %v532 = vsel %vm329, %v488, 0.0
        %533 = vadd.xlane.f32.xlu0 %v532
        %v534 = vpop.xlane.xlu0 %533
        %v535 = vsel %vm329, %v489, 0.0
        %536 = vadd.xlane.f32.xlu0 %v535
        %v537 = vpop.xlane.xlu0 %536
        %s538 = sld [smem:[#allocation2]]
        %v539 = vstv %s538
        %v540 = vadd.f32 %v492, %v539
        %v541 = vadd.f32 %v495, %v539
        %v542 = vadd.f32 %v498, %v539
        %v543 = vadd.f32 %v501, %v539
        %v544 = vadd.f32 %v504, %v539
        %v545 = vadd.f32 %v507, %v539
        %v546 = vadd.f32 %v510, %v539
        %v547 = vadd.f32 %v513, %v539
        %v548 = vadd.f32 %v516, %v539
        %v549 = vadd.f32 %v519, %v539
        %v550 = vadd.f32 %v522, %v539
        %v551 = vadd.f32 %v525, %v539
        %v552 = vadd.f32 %v528, %v539
        %v553 = vadd.f32 %v531, %v539
        %v554 = vadd.f32 %v534, %v539
        %v555 = vadd.f32 %v537, %v539
        %v556 = vmul.f32 %v540, 1.442695
        %v557 = vpow.pop %v556
        %v558 = vmul.f32 %v541, 1.442695
        %v559 = vpow.pop %v558
        %v560 = vmul.f32 %v542, 1.442695
        %v561 = vpow.pop %v560
        %v562 = vmul.f32 %v543, 1.442695
        %v563 = vpow.pop %v562
        %v564 = vmul.f32 %v544, 1.442695
        %v565 = vpow.pop %v564
        %v566 = vmul.f32 %v545, 1.442695
        %v567 = vpow.pop %v566
        %v568 = vmul.f32 %v546, 1.442695
        %v569 = vpow.pop %v568
        %v570 = vmul.f32 %v547, 1.442695
        %v571 = vpow.pop %v570
        %v572 = vmul.f32 %v548, 1.442695
        %v573 = vpow.pop %v572
        %v574 = vmul.f32 %v549, 1.442695
        %v575 = vpow.pop %v574
        %v576 = vmul.f32 %v550, 1.442695
        %v577 = vpow.pop %v576
        %v578 = vmul.f32 %v551, 1.442695
        %v579 = vpow.pop %v578
        %v580 = vmul.f32 %v552, 1.442695
        %v581 = vpow.pop %v580
        %v582 = vmul.f32 %v553, 1.442695
        %v583 = vpow.pop %v582
        %v584 = vmul.f32 %v554, 1.442695
        %v585 = vpow.pop %v584
        %v586 = vmul.f32 %v555, 1.442695
        %v587 = vpow.pop %v586
        %v588 = vld [vmem:[%s279] sm:$0xff]
        %v589 = vld [vmem:[%s279 + $0x8] sm:$0xff]
        %v590 = vld [vmem:[%s279 + $0x10] sm:$0xff]
        %v591 = vld [vmem:[%s279 + $0x18] sm:$0xff]
        %v592 = vld [vmem:[%s279 + $0x20] sm:$0xff]
        %v593 = vld [vmem:[%s279 + $0x28] sm:$0xff]
        %v594 = vld [vmem:[%s279 + $0x30] sm:$0xff]
        %v595 = vld [vmem:[%s279 + $0x38] sm:$0xff]
        %v596 = vld [vmem:[%s279 + $0x40] sm:$0xff]
        %v597 = vld [vmem:[%s279 + $0x48] sm:$0xff]
        %v598 = vld [vmem:[%s279 + $0x50] sm:$0xff]
        %v599 = vld [vmem:[%s279 + $0x58] sm:$0xff]
        %v600 = vld [vmem:[%s279 + $0x60] sm:$0xff]
        %v601 = vld [vmem:[%s279 + $0x68] sm:$0xff]
        %v602 = vld [vmem:[%s279 + $0x70] sm:$0xff]
        %v603 = vld [vmem:[%s279 + $0x78] sm:$0xff]
        %v604 = vmul.f32 %v557, %v588
        %v605 = vmul.f32 %v559, %v589
        %v606 = vmul.f32 %v561, %v590
        %v607 = vmul.f32 %v563, %v591
        %v608 = vmul.f32 %v565, %v592
        %v609 = vmul.f32 %v567, %v593
        %v610 = vmul.f32 %v569, %v594
        %v611 = vmul.f32 %v571, %v595
        %v612 = vmul.f32 %v573, %v596
        %v613 = vmul.f32 %v575, %v597
        %v614 = vmul.f32 %v577, %v598
        %v615 = vmul.f32 %v579, %v599
        %v616 = vmul.f32 %v581, %v600
        %v617 = vmul.f32 %v583, %v601
        %v618 = vmul.f32 %v585, %v602
        %v619 = vmul.f32 %v587, %v603
        %vm620 = vcmask 7168
        %v621 = vsel %vm620, %v604, 0.0
        %v622 = vsel %vm620, %v605, 0.0
        %v623 = vadd.f32 %v621, %v622
        %v624 = vrot.slane %v623, 4
        %v625 = vadd.f32 %v623, %v624
        %v626 = vrot.slane %v625, 2
        %v627 = vadd.f32 %v625, %v626
        %v628 = vrot.slane %v627, 1
        %v629 = vadd.f32 %v627, %v628
        %v630 = vsel %vm620, %v606, 0.0
        %v631 = vsel %vm620, %v607, 0.0
        %v632 = vadd.f32 %v630, %v631
        %v633 = vrot.slane %v632, 4
        %v634 = vadd.f32 %v632, %v633
        %v635 = vrot.slane %v634, 2
        %v636 = vadd.f32 %v634, %v635
        %v637 = vrot.slane %v636, 1
        %v638 = vadd.f32 %v636, %v637
        %v639 = vsel %vm620, %v608, 0.0
        %v640 = vsel %vm620, %v609, 0.0
        %v641 = vadd.f32 %v639, %v640
        %v642 = vrot.slane %v641, 4
        %v643 = vadd.f32 %v641, %v642
        %v644 = vrot.slane %v643, 2
        %v645 = vadd.f32 %v643, %v644
        %v646 = vrot.slane %v645, 1
        %v647 = vadd.f32 %v645, %v646
        %v648 = vsel %vm620, %v610, 0.0
        %v649 = vsel %vm620, %v611, 0.0
        %v650 = vadd.f32 %v648, %v649
        %v651 = vrot.slane %v650, 4
        %v652 = vadd.f32 %v650, %v651
        %v653 = vrot.slane %v652, 2
        %v654 = vadd.f32 %v652, %v653
        %v655 = vrot.slane %v654, 1
        %v656 = vadd.f32 %v654, %v655
        %v657 = vsel %vm620, %v612, 0.0
        %v658 = vsel %vm620, %v613, 0.0
        %v659 = vadd.f32 %v657, %v658
        %v660 = vrot.slane %v659, 4
        %v661 = vadd.f32 %v659, %v660
        %v662 = vrot.slane %v661, 2
        %v663 = vadd.f32 %v661, %v662
        %v664 = vrot.slane %v663, 1
        %v665 = vadd.f32 %v663, %v664
        %v666 = vsel %vm620, %v614, 0.0
        %v667 = vsel %vm620, %v615, 0.0
        %v668 = vadd.f32 %v666, %v667
        %v669 = vrot.slane %v668, 4
        %v670 = vadd.f32 %v668, %v669
        %v671 = vrot.slane %v670, 2
        %v672 = vadd.f32 %v670, %v671
        %v673 = vrot.slane %v672, 1
        %v674 = vadd.f32 %v672, %v673
        %v675 = vsel %vm620, %v616, 0.0
        %v676 = vsel %vm620, %v617, 0.0
        %v677 = vadd.f32 %v675, %v676
        %v678 = vrot.slane %v677, 4
        %v679 = vadd.f32 %v677, %v678
        %v680 = vrot.slane %v679, 2
        %v681 = vadd.f32 %v679, %v680
        %v682 = vrot.slane %v681, 1
        %v683 = vadd.f32 %v681, %v682
        %v684 = vsel %vm620, %v618, 0.0
        %v685 = vsel %vm620, %v619, 0.0
        %v686 = vadd.f32 %v684, %v685
        %v687 = vrot.slane %v686, 4
        %v688 = vadd.f32 %v686, %v687
        %v689 = vrot.slane %v688, 2
        %v690 = vadd.f32 %v688, %v689
        %v691 = vrot.slane %v690, 1
        %v692 = vadd.f32 %v690, %v691
        %v693 = vadd.f32 %v629, 1e-08
        %v694 = vadd.f32 %v638, 1e-08
        %v695 = vadd.f32 %v647, 1e-08
        %v696 = vadd.f32 %v656, 1e-08
        %v697 = vadd.f32 %v665, 1e-08
        %v698 = vadd.f32 %v674, 1e-08
        %v699 = vadd.f32 %v683, 1e-08
        %v700 = vadd.f32 %v692, 1e-08
        %v701 = vrcp.pop %v693
        %v702 = vrcp.pop %v694
        %v703 = vrcp.pop %v695
        %v704 = vrcp.pop %v696
        %v705 = vrcp.pop %v697
        %v706 = vrcp.pop %v698
        %v707 = vrcp.pop %v699
        %v708 = vrcp.pop %v700
        %v709 = vmul.f32 %v604, %v701
        %v710 = vmul.f32 %v605, %v701
        %v711 = vmul.f32 %v606, %v702
        %v712 = vmul.f32 %v607, %v702
        %v713 = vmul.f32 %v608, %v703
        %v714 = vmul.f32 %v609, %v703
        %v715 = vmul.f32 %v610, %v704
        %v716 = vmul.f32 %v611, %v704
        %v717 = vmul.f32 %v612, %v705
        %v718 = vmul.f32 %v613, %v705
        %v719 = vmul.f32 %v614, %v706
        %v720 = vmul.f32 %v615, %v706
        %v721 = vmul.f32 %v616, %v707
        %v722 = vmul.f32 %v617, %v707
        %v723 = vmul.f32 %v618, %v708
        %v724 = vmul.f32 %v619, %v708
        %726 = vset.pattern.permute.xlu0 0
        %727 = vperm.xlu0 %726, %v709
        %v728 = vpop.permute.xlu0 %727
        %731 = vset.pattern.permute.xlu0 0
        %732 = vperm.xlu0 %731, %v710
        %v733 = vpop.permute.xlu0 %732
        %736 = vset.pattern.permute.xlu0 0
        %737 = vperm.xlu0 %736, %v711
        %v738 = vpop.permute.xlu0 %737
        %741 = vset.pattern.permute.xlu0 0
        %742 = vperm.xlu0 %741, %v712
        %v743 = vpop.permute.xlu0 %742
        %746 = vset.pattern.permute.xlu0 0
        %747 = vperm.xlu0 %746, %v713
        %v748 = vpop.permute.xlu0 %747
        %751 = vset.pattern.permute.xlu0 0
        %752 = vperm.xlu0 %751, %v714
        %v753 = vpop.permute.xlu0 %752
        %756 = vset.pattern.permute.xlu0 0
        %757 = vperm.xlu0 %756, %v715
        %v758 = vpop.permute.xlu0 %757
        %761 = vset.pattern.permute.xlu0 0
        %762 = vperm.xlu0 %761, %v716
        %v763 = vpop.permute.xlu0 %762
        %766 = vset.pattern.permute.xlu0 0
        %767 = vperm.xlu0 %766, %v717
        %v768 = vpop.permute.xlu0 %767
        %771 = vset.pattern.permute.xlu0 0
        %772 = vperm.xlu0 %771, %v718
        %v773 = vpop.permute.xlu0 %772
        %776 = vset.pattern.permute.xlu0 0
        %777 = vperm.xlu0 %776, %v719
        %v778 = vpop.permute.xlu0 %777
        %781 = vset.pattern.permute.xlu0 0
        %782 = vperm.xlu0 %781, %v720
        %v783 = vpop.permute.xlu0 %782
        %786 = vset.pattern.permute.xlu0 0
        %787 = vperm.xlu0 %786, %v721
        %v788 = vpop.permute.xlu0 %787
        %791 = vset.pattern.permute.xlu0 0
        %792 = vperm.xlu0 %791, %v722
        %v793 = vpop.permute.xlu0 %792
        %796 = vset.pattern.permute.xlu0 0
        %797 = vperm.xlu0 %796, %v723
        %v798 = vpop.permute.xlu0 %797
        %801 = vset.pattern.permute.xlu0 0
        %802 = vperm.xlu0 %801, %v724
        %v803 = vpop.permute.xlu0 %802
        %v805 = vmul.f32 %v282, %v728
        %v806 = vmul.f32 %v283, %v733
        %v807 = vmul.f32 %v284, %v738
        %v808 = vmul.f32 %v285, %v743
        %v809 = vmul.f32 %v286, %v748
        %v810 = vmul.f32 %v287, %v753
        %v811 = vmul.f32 %v288, %v758
        %v812 = vmul.f32 %v289, %v763
        %v813 = vmul.f32 %v290, %v768
        %v814 = vmul.f32 %v291, %v773
        %v815 = vmul.f32 %v292, %v778
        %v816 = vmul.f32 %v293, %v783
        %v817 = vmul.f32 %v294, %v788
        %v818 = vmul.f32 %v295, %v793
        %v819 = vmul.f32 %v296, %v798
        %v820 = vmul.f32 %v297, %v803
        %v821 = vsel %vm329, %v805, 0.0
        %v822 = vsel %vm329, %v806, 0.0
        %v823 = vadd.f32 %v821, %v822
        %v824 = vrot.slane %v823, 4
        %v825 = vadd.f32 %v823, %v824
        %v826 = vrot.slane %v825, 2
        %v827 = vadd.f32 %v825, %v826
        %v828 = vrot.slane %v827, 1
        %v829 = vadd.f32 %v827, %v828
        %v830 = vsel %vm329, %v807, 0.0
        %v831 = vsel %vm329, %v808, 0.0
        %v832 = vadd.f32 %v830, %v831
        %v833 = vrot.slane %v832, 4
        %v834 = vadd.f32 %v832, %v833
        %v835 = vrot.slane %v834, 2
        %v836 = vadd.f32 %v834, %v835
        %v837 = vrot.slane %v836, 1
        %v838 = vadd.f32 %v836, %v837
        %v839 = vsel %vm329, %v809, 0.0
        %v840 = vsel %vm329, %v810, 0.0
        %v841 = vadd.f32 %v839, %v840
        %v842 = vrot.slane %v841, 4
        %v843 = vadd.f32 %v841, %v842
        %v844 = vrot.slane %v843, 2
        %v845 = vadd.f32 %v843, %v844
        %v846 = vrot.slane %v845, 1
        %v847 = vadd.f32 %v845, %v846
        %v848 = vsel %vm329, %v811, 0.0
        %v849 = vsel %vm329, %v812, 0.0
        %v850 = vadd.f32 %v848, %v849
        %v851 = vrot.slane %v850, 4
        %v852 = vadd.f32 %v850, %v851
        %v853 = vrot.slane %v852, 2
        %v854 = vadd.f32 %v852, %v853
        %v855 = vrot.slane %v854, 1
        %v856 = vadd.f32 %v854, %v855
        %v857 = vsel %vm329, %v813, 0.0
        %v858 = vsel %vm329, %v814, 0.0
        %v859 = vadd.f32 %v857, %v858
        %v860 = vrot.slane %v859, 4
        %v861 = vadd.f32 %v859, %v860
        %v862 = vrot.slane %v861, 2
        %v863 = vadd.f32 %v861, %v862
        %v864 = vrot.slane %v863, 1
        %v865 = vadd.f32 %v863, %v864
        %v866 = vsel %vm329, %v815, 0.0
        %v867 = vsel %vm329, %v816, 0.0
        %v868 = vadd.f32 %v866, %v867
        %v869 = vrot.slane %v868, 4
        %v870 = vadd.f32 %v868, %v869
        %v871 = vrot.slane %v870, 2
        %v872 = vadd.f32 %v870, %v871
        %v873 = vrot.slane %v872, 1
        %v874 = vadd.f32 %v872, %v873
        %v875 = vsel %vm329, %v817, 0.0
        %v876 = vsel %vm329, %v818, 0.0
        %v877 = vadd.f32 %v875, %v876
        %v878 = vrot.slane %v877, 4
        %v879 = vadd.f32 %v877, %v878
        %v880 = vrot.slane %v879, 2
        %v881 = vadd.f32 %v879, %v880
        %v882 = vrot.slane %v881, 1
        %v883 = vadd.f32 %v881, %v882
        %v884 = vsel %vm329, %v819, 0.0
        %v885 = vsel %vm329, %v820, 0.0
        %v886 = vadd.f32 %v884, %v885
        %v887 = vrot.slane %v886, 4
        %v888 = vadd.f32 %v886, %v887
        %v889 = vrot.slane %v888, 2
        %v890 = vadd.f32 %v888, %v889
        %v891 = vrot.slane %v890, 1
        %v892 = vadd.f32 %v890, %v891
        %vm901 = vcmask 1041409
        %v902 = vsel %vm901, %v838, %v829
        %vm903 = vcmask 1042434
        %v904 = vsel %vm903, %v847, %v902
        %vm905 = vcmask 1043459
        %v906 = vsel %vm905, %v856, %v904
        %vm907 = vcmask 1044484
        %v908 = vsel %vm907, %v865, %v906
        %vm909 = vcmask 1045509
        %v910 = vsel %vm909, %v874, %v908
        %vm911 = vcmask 1046534
        %v912 = vsel %vm911, %v883, %v910
        %vm913 = vcmask 1047559
        %v914 = vsel %vm913, %v892, %v912
        %916 = vst.msk [vmem:[%s266] sm:$0xff] %vm329, %v914
        %s917 = sand.u32 %s165, 1
        %s918 = scalar_lea.sflag [#allocation4], %s917
        %s919 = sand.u32 %s165, 1
        %s920 = smul.addr %s919, 8
        %s921 = scalar_lea.vmem [#allocation3], %s920
        // Predicated region
        $region45: #{tpu_custom_call.1} parent=43 // pred_check
          %p922 = pneg %p175
        $region46: #{tpu_custom_call.1} parent=43 // pred_check_branch
          %924 = sbr.rel (%p922) target = $region48
        $region47: #{tpu_custom_call.1} parent=43 // pred_region
          %s926 = ssub.s32 128, 128
          %927 = vsyncadd %s918, %s926
          %s928 = smul.addr %s21, 128
          %s929 = scalar_lea.hbm %s6, %s928
          %s931 = sshll.u32 %s921, 4
          %s932 = int_to_ptr.vmem [resolvable:$true] %s931
          %934 = dma.vmem_to_hbm [thread:$0]  %s932, 128, %s929, %s918
        $region48: #{tpu_custom_call.1} parent=43 // pred_fallthru
          _
      $region44: #{tpu_custom_call.1} parent=5 // pred_fallthru
        _
      %p935 = scmp.le.s32.totalorder 2, %s16
      // Predicated region
      $region49: #{tpu_custom_call.1} parent=5 // pred_check
        %p936 = pneg %p935
      $region50: #{tpu_custom_call.1} parent=5 // pred_check_branch
        %938 = sbr.rel (%p936) target = $region52
      $region51: #{tpu_custom_call.1} parent=5 // pred_region
        %s939 = ssub.s32 %s16, 2
        // Predicated region
        $region53: #{tpu_custom_call.1} parent=51 // pred_check
          %p940 = pneg %p181
        $region54: #{tpu_custom_call.1} parent=51 // pred_check_branch
          %942 = sbr.rel (%p940) target = $region56
        $region55: #{tpu_custom_call.1} parent=51 // pred_region
          %s943 = sand.u32 %s166, 1
          %s944 = scalar_lea.sflag [#allocation4], %s943
          %s945 = sand.u32 %s166, 1
          %s946 = smul.addr %s945, 8
          %s947 = scalar_lea.vmem [#allocation3], %s946
          %948 = dma.done %s944, 128
        $region56: #{tpu_custom_call.1} parent=51 // pred_fallthru
          _
      $region52: #{tpu_custom_call.1} parent=5 // pred_fallthru
        _
    $region6: #{tpu_custom_call.1} parent=1 // loop_footer
      %s20 = sadd.s32 1, %s16
    $region7: #{tpu_custom_call.1} parent=1 // loop_footer_branch
      %15 = sbr.rel target = $region3
    $region8: #{tpu_custom_call.1} parent=1 // loop_exit
      _
    %949 = vsyncpa [#allocation4], 1
    %s950 = scalar_lea.sflag [#allocation4], 1
    %951 = vsyncpa %s950, 1

</llo_original>
